<compile_context>
chip_gen: v7x
topology: tpu7x:2x2x1
jax: 0.10.0
libtpu: 0.0.40
codegen_flags: <defaults>
</compile_context>

<pallas_src>
import functools

import jax
import jax.numpy as jnp
from jax.experimental import pallas as pl
from jax.experimental.pallas import tpu as pltpu


_MAX_TILE_BYTES = 8 * 1024 * 1024    # per x / out tile (Pallas double-buffers)
_VMEM_LIMIT_CAP = 48 * 1024 * 1024   # stay under v7x's 64 MiB physical VMEM


def _add_prompt_kernel(x_ref, prompt_ref, o_ref):
    # x_ref: (TB, TN); prompt_ref: (1, TN) -> broadcasts over the batch rows.
    o_ref[...] = (x_ref[...] + prompt_ref[...]).astype(o_ref.dtype)


def _choose_tiles(B, N, itemsize, max_tile_bytes=_MAX_TILE_BYTES):
    """Pick (tb, tn, sublane) obeying the (8, 128) block rule.

    tn is a multiple of 128 (or the full extent N); tb is a multiple of the
    dtype sublane count (or the full extent B).  Neither has to divide its
    array extent: the grid uses pl.cdiv and Pallas masks the ragged tail, so
    the byte budget is enforced even when C*H*W has no 128-aligned divisor.
    """
    sub = max(8, 32 // itemsize)                  # 8 f32, 16 bf16, 32 int8
    budget_elems = max(128, max_tile_bytes // itemsize)

    # Lane tile: full row if it fits next to at least one sublane group of
    # batch rows, otherwise the largest 128-aligned width within the budget.
    min_tb = B if B < sub else sub
    if N * min_tb <= budget_elems:
        tn = N                                    # full extent: always legal
    else:
        tn = max(128, (budget_elems // min_tb) // 128 * 128)

    # Batch tile: as many sublane groups as the budget allows.
    if B <= sub:
        tb = B                                    # full extent (< 8 is legal)
    else:
        rows = max(sub, budget_elems // tn)
        if rows >= B:
            tb = B                                # whole batch in one tile
        else:
            tb = max(sub, (rows // sub) * sub)    # sublane-aligned, never 2..7
    return tb, tn, sub


def _ensure_min_grid(B, N, tb, tn, sub):
    """Guarantee >= 2 grid steps so v7x can shard across its 2 TensorCores."""
    if pl.cdiv(B, tb) * pl.cdiv(N, tn) >= 2:
        return tb, tn
    if B >= 2 * sub:
        # Split the batch axis (keeps the prompt fully resident: 1 lane tile).
        half = ((pl.cdiv(B, 2) + sub - 1) // sub) * sub
        return min(tb, half), tn
    if N >= 256 and tn > 128:
        # Split the lane axis instead (batch too small to split legally).
        half = pl.cdiv(pl.cdiv(N, 2), 128) * 128
        return tb, max(128, min(tn, half))
    return tb, tn                                 # tiny problem: leave as-is


@functools.lru_cache(maxsize=None)
def _build_forward(B, C, H, W, dtype_name, tb, tn, vmem_limit):
    """Cached jitted forward for one (shape, dtype, tiling) configuration."""
    N = C * H * W
    dtype = jnp.dtype(dtype_name)
    grid = (pl.cdiv(N, tn), pl.cdiv(B, tb))       # lane outer, batch inner

    add = pl.pallas_call(
        _add_prompt_kernel,
        out_shape=jax.ShapeDtypeStruct((B, N), dtype),
        grid_spec=pltpu.PrefetchScalarGridSpec(
            num_scalar_prefetch=0,
            grid=grid,
            in_specs=[
                # x tile walks batch on the inner grid axis, lanes on outer.
                pl.BlockSpec((tb, tn), lambda l, b: (b, l)),
                # Prompt: index (0, l) is constant across the inner batch
                # axis -> its DMA is skipped between consecutive steps.
                pl.BlockSpec((1, tn), lambda l, b: (0, l)),
            ],
            out_specs=pl.BlockSpec((tb, tn), lambda l, b: (b, l)),
        ),
        compiler_params=pltpu.CompilerParams(
            dimension_semantics=("parallel", "parallel"),
            vmem_limit_bytes=vmem_limit,
        ),
    )

    def fwd(x, prompt_flat):
        out_flat = add(x.reshape(B, N), prompt_flat)
        return out_flat.reshape(B, C, H, W)

    return jax.jit(fwd)


class PadPrompterPallas:
    def __init__(self, prompt_size, image_size, key):
        self.prompt_size = prompt_size
        self.image_size = image_size
        self.base_size = image_size - prompt_size * 2
        k_up, k_down, k_left, k_right = jax.random.split(key, 4)
        # Same shapes as the PyTorch nn.Parameters, deterministic init.
        self.pad_up = jax.random.normal(
            k_up, (1, 3, prompt_size, image_size), jnp.float32)
        self.pad_down = jax.random.normal(
            k_down, (1, 3, prompt_size, image_size), jnp.float32)
        self.pad_left = jax.random.normal(
            k_left, (1, 3, self.base_size, prompt_size), jnp.float32)
        self.pad_right = jax.random.normal(
            k_right, (1, 3, self.base_size, prompt_size), jnp.float32)
        # Prompt is hoisted out of the per-call path: cached per (H, W, dtype).
        self._prompt_cache = {}

    def _build_prompt_4d(self, H, W):
        # Mirrors the PyTorch concatenation exactly (one-time glue).
        base = jnp.zeros((1, 3, self.base_size, self.base_size), jnp.float32)
        prompt = jnp.concatenate([self.pad_left, base, self.pad_right], axis=3)
        prompt = jnp.concatenate([self.pad_up, prompt, self.pad_down], axis=2)
        return prompt[:, :, :H, :W]

    def _prompt_flat(self, H, W, dtype):
        key = (H, W, jnp.dtype(dtype).name)
        if key not in self._prompt_cache:
            prompt = self._build_prompt_4d(H, W)            # (1, 3, H, W) f32
            # Match x's dtype so the kernel streams x-width bytes end to end
            # (avoids doubling the output write traffic for bf16/fp16 inputs).
            prompt = prompt.astype(dtype).reshape(1, 3 * H * W)
            self._prompt_cache[key] = prompt
        return self._prompt_cache[key]

    def __call__(self, x):
        B, C, H, W = x.shape
        assert C == 3, "PadPrompter is defined for 3-channel images"
        assert H <= self.image_size and W <= self.image_size, (
            "input spatial size exceeds image_size")

        dtype = x.dtype
        N = C * H * W
        itemsize = jnp.dtype(dtype).itemsize
        prompt_flat = self._prompt_flat(H, W, dtype)        # (1, N), x.dtype

        tb, tn, sub = _choose_tiles(B, N, itemsize)
        tb, tn = _ensure_min_grid(B, N, tb, tn, sub)

        # Actual double-buffered footprint: 2*(x tile + out tile + prompt row).
        tile_bytes = tb * tn * itemsize
        vmem_needed = 2 * (2 * tile_bytes + tn * itemsize)
        vmem_limit = min(_VMEM_LIMIT_CAP,
                         max(32 * 1024 * 1024, 2 * vmem_needed))

        fwd = _build_forward(B, C, H, W, jnp.dtype(dtype).name,
                             tb, tn, vmem_limit)
        return fwd(x, prompt_flat)


def _reference_forward(module, x):
    # Pure-JAX reference mirroring the PyTorch forward.
    B = x.shape[0]
    prompt = module._build_prompt_4d(x.shape[-2], x.shape[-1])
    prompt = jnp.concatenate([prompt] * B, axis=0).astype(x.dtype)
    return x + prompt


if __name__ == "__main__":
    key = jax.random.PRNGKey(0)
    k_params, k_x = jax.random.split(key)

    prompt_size = 4
    image_size = 16
    B = 2

    module = PadPrompterPallas(prompt_size, image_size, k_params)

    x = jax.random.normal(k_x, (B, 3, image_size, image_size), jnp.float32)

    out = module(x)
    out = jax.block_until_ready(out)

    ref = _reference_forward(module, x)
    assert out.shape == ref.shape == (B, 3, image_size, image_size)
    assert out.dtype == x.dtype
    assert jnp.allclose(out, ref, atol=1e-6), "mismatch vs reference"

    print("KERNEL_OK")
</pallas_src>

<mosaic_0001>
module attributes {stable_mosaic.version = 11 : i64} {
  func.func @_add_prompt_kernel(%arg0: i32, %arg1: i32, %arg2: memref<2x384xf32, #tpu.memory_space<vmem>>, %arg3: memref<1x384xf32, #tpu.memory_space<vmem>>, %arg4: memref<2x384xf32, #tpu.memory_space<vmem>>) attributes {dimension_semantics = [#tpu.dimension_semantics<parallel>, #tpu.dimension_semantics<parallel>], iteration_bounds = array<i64: 2, 1>, scalar_prefetch = 0 : i64, scratch_operands = 0 : i64, tpu.core_type = #tpu.core_type<tc>, window_params = [{transform_indices = @transform_0, window_bounds = array<i64: 2, 384>}, {transform_indices = @transform_1, window_bounds = array<i64: 1, 384>}, {transform_indices = @transform_2, window_bounds = array<i64: 2, 384>}]} {
    %c0 = arith.constant 0 : index
    %c0_0 = arith.constant 0 : index
    %0 = vector.load %arg2[%c0, %c0_0] : memref<2x384xf32, #tpu.memory_space<vmem>>, vector<2x384xf32>
    %c0_1 = arith.constant 0 : index
    %c0_2 = arith.constant 0 : index
    %1 = vector.load %arg3[%c0_1, %c0_2] : memref<1x384xf32, #tpu.memory_space<vmem>>, vector<1x384xf32>
    %2 = vector.broadcast %1 : vector<1x384xf32> to vector<2x384xf32>
    %3 = arith.addf %0, %2 : vector<2x384xf32>
    %c0_3 = arith.constant 0 : index
    %c0_4 = arith.constant 0 : index
    %4 = vector.load %arg4[%c0_3, %c0_4] : memref<2x384xf32, #tpu.memory_space<vmem>>, vector<2x384xf32>
    tpu.vector_store %arg4[%c0_3, %c0_4], %3 {strides = array<i32>} : memref<2x384xf32, #tpu.memory_space<vmem>>, vector<2x384xf32>,
    return
  }
  func.func @transform_0(%arg0: i32, %arg1: i32) -> (i32, i32) {
    %c0_i32 = arith.constant 0 : i32
    return %arg1, %arg0 : i32, i32
  }
  func.func @transform_1(%arg0: i32, %arg1: i32) -> (i32, i32) {
    %c0_i32 = arith.constant 0 : i32
    %c0_i32_0 = arith.constant 0 : i32
    return %c0_i32, %arg0 : i32, i32
  }
  func.func @transform_2(%arg0: i32, %arg1: i32) -> (i32, i32) {
    %c0_i32 = arith.constant 0 : i32
    return %arg1, %arg0 : i32, i32
  }
}

</mosaic_0001>

<llo_original>
// kernel: fwd.1
$region0: #{fwd.1}
  #allocation0 [shape = 'u32[]', space=smem, size = 0x4, offset = 0x4, fixed_abs, tag = 'smem constant byte address 0x4 - core index']
  #allocation1 [shape = 'u32[144,128]{1,0:T(1,128)}', space=vmem, size = 0x12000, scoped, tag = 'internal scratch']
  %s0 = inlined_call_operand.vmem [shape: f32[2,768], index: 0, kind: input, shape index: {}]
  %s1 = inlined_call_operand.vmem [shape: f32[1,768], index: 1, kind: input, shape index: {}]
  %s2 = inlined_call_operand.vmem [shape: f32[2,768], index: 2, kind: output, shape index: {}]
  %s3 = sld [smem:[#allocation0]]
  $region41: #{fwd.1} parent=0
    _
  %s5 = ssub.s32 1, %s3
  %s6 = scalar_select 0, %s5, %s3
  loop: start=0, step=1, limit=4
  $region2: #{fwd.1} parent=0 // loop_pre_header
    _
  $region3: #{fwd.1} parent=0 // loop_header
    %s8 = sphi 0, %s12
    %p9 = scmp.ge.s32.totalorder %s8, 4
    %s15 = sphi 0, %s27
    %s16 = sphi 0, %s23
    %s17 = sphi 0, %s15
    %s18 = sphi 0, %s16
    %s19 = sphi 0, %s17
    %s20 = sphi 0, %s18
    %s32 = sphi 0, %s34
    %s35 = sphi 0, %s32
    %s36 = sphi 0, %s35
    %s52 = sphi 0, %s36
    %s58 = sphi 0, %s60
    %s61 = sphi 0, %s58
    %s62 = sphi 0, %s61
    %s78 = sphi 0, %s62
    %s86 = sphi 0, %s88
    %s89 = sphi 0, %s86
    %s90 = sphi 0, %s89
    %s106 = sphi 0, %s90
  $region4: #{fwd.1} parent=0 // loop_header_branch
    %11 = sbr.rel (%p9) target = $region8
  $region5: #{fwd.1} parent=0 // loop_body
    %s13 = ssub.s32 %s8, 1
    %s14 = ssub.s32 %s8, 2
    %s21 = sadd.s32 1, %s16
    %p22 = scmp.ge.s32.totalorder %s21, 1
    %s23 = scalar_select %p22, 0, %s21
    %s24 = sadd.s32 1, %s15
    %s25 = scalar_select %p22, %s24, %s15
    %p26 = scmp.ge.s32.totalorder %s25, 2
    %s27 = scalar_select %p26, 0, %s25
    %s28 = ssub.s32 %s16, %s23
    %s29 = ssub.s32 %s15, %s27
    %s30 = sor.u32 %s28, %s29
    %p31 = scmp.eq.s32.totalorder %s30, 0
    %s33 = sadd.s32 %s32, 1
    %s34 = scalar_select %p31, %s32, %s33
    %p37 = pneg %p31
    %p38 = scmp.eq.s32.totalorder %s8, 1
    %p39 = por %p37, %p38
    %p40 = scmp.ne.s32.totalorder %s32, %s35
    %p41 = scmp.eq.s32.totalorder %s8, 0
    %p42 = por %p40, %p41
    %p43 = scmp.ne.s32.totalorder %s32, %s35
    %p44 = scmp.eq.s32.totalorder %s13, 1
    %p45 = por %p43, %p44
    %p46 = scmp.ne.s32.totalorder %s35, %s36
    %p47 = scmp.eq.s32.totalorder %s13, 0
    %p48 = por %p46, %p47
    %p49 = scmp.ne.s32.totalorder %s35, %s36
    %p50 = scmp.eq.s32.totalorder %s14, 1
    %p51 = por %p49, %p50
    %p53 = scmp.ne.s32.totalorder %s36, %s52
    %p54 = scmp.eq.s32.totalorder %s14, 0
    %p55 = por %p53, %p54
    %s56 = ssub.s32 %s15, %s27
    %p57 = scmp.eq.s32.totalorder %s56, 0
    %s59 = sadd.s32 %s58, 1
    %s60 = scalar_select %p57, %s58, %s59
    %p63 = pneg %p57
    %p64 = scmp.eq.s32.totalorder %s8, 1
    %p65 = por %p63, %p64
    %p66 = scmp.ne.s32.totalorder %s58, %s61
    %p67 = scmp.eq.s32.totalorder %s8, 0
    %p68 = por %p66, %p67
    %p69 = scmp.ne.s32.totalorder %s58, %s61
    %p70 = scmp.eq.s32.totalorder %s13, 1
    %p71 = por %p69, %p70
    %p72 = scmp.ne.s32.totalorder %s61, %s62
    %p73 = scmp.eq.s32.totalorder %s13, 0
    %p74 = por %p72, %p73
    %p75 = scmp.ne.s32.totalorder %s61, %s62
    %p76 = scmp.eq.s32.totalorder %s14, 1
    %p77 = por %p75, %p76
    %p79 = scmp.ne.s32.totalorder %s62, %s78
    %p80 = scmp.eq.s32.totalorder %s14, 0
    %p81 = por %p79, %p80
    %s82 = ssub.s32 %s16, %s23
    %s83 = ssub.s32 %s15, %s27
    %s84 = sor.u32 %s82, %s83
    %p85 = scmp.eq.s32.totalorder %s84, 0
    %s87 = sadd.s32 %s86, 1
    %s88 = scalar_select %p85, %s86, %s87
    %p91 = pneg %p85
    %p92 = scmp.eq.s32.totalorder %s8, 1
    %p93 = por %p91, %p92
    %p94 = scmp.ne.s32.totalorder %s86, %s89
    %p95 = scmp.eq.s32.totalorder %s8, 0
    %p96 = por %p94, %p95
    %p97 = scmp.ne.s32.totalorder %s86, %s89
    %p98 = scmp.eq.s32.totalorder %s13, 1
    %p99 = por %p97, %p98
    %p100 = scmp.ne.s32.totalorder %s89, %s90
    %p101 = scmp.eq.s32.totalorder %s13, 0
    %p102 = por %p100, %p101
    %p103 = scmp.ne.s32.totalorder %s89, %s90
    %p104 = scmp.eq.s32.totalorder %s14, 1
    %p105 = por %p103, %p104
    %p107 = scmp.ne.s32.totalorder %s90, %s106
    %p108 = scmp.eq.s32.totalorder %s14, 0
    %p109 = por %p107, %p108
    %p110 = scmp.le.s32.totalorder 1, %s8
    %p111 = scmp.lt.s32.totalorder %s8, 3
    %p112 = pnand %p110, %p111
    %p113 = pneg %p112
    // Predicated region
    $region9: #{fwd.1} parent=5 // pred_check
      _
    $region10: #{fwd.1} parent=5 // pred_check_branch
      %115 = sbr.rel (%p112) target = $region12
    $region11: #{fwd.1} parent=5 // pred_region
      %s116 = ssub.s32 %s8, 1
    $region12: #{fwd.1} parent=5 // pred_fallthru
      _
    %p117 = scmp.lt.s32.totalorder %s8, 2
    // Predicated region
    $region13: #{fwd.1} parent=5 // pred_check
      %p118 = pneg %p117
    $region14: #{fwd.1} parent=5 // pred_check_branch
      %120 = sbr.rel (%p118) target = $region16
    $region15: #{fwd.1} parent=5 // pred_region
      // Predicated region
      $region17: #{fwd.1} parent=15 // pred_check
        %p121 = pneg %p42
      $region18: #{fwd.1} parent=15 // pred_check_branch
        %123 = sbr.rel (%p121) target = $region20
      $region19: #{fwd.1} parent=15 // pred_region
        %s124 = smul.u32 3, %s15
        %p125 = scmp.lt.s32.totalorder %s16, 0
        %s126 = scalar_select %p125, %s16, 0
        %p127 = scmp.lt.s32.totalorder %s124, 5
        %s128 = scalar_select %p127, %s124, 5
        %s129 = smul.addr %s126, 6
        %s130 = sadd.s32 %s128, %s129
        %s131 = smul.addr %s130, 2
        %s132 = scalar_lea.vmem %s0, %s131
        %s133 = smul.u32 3, %s15
      $region20: #{fwd.1} parent=15 // pred_fallthru
        _
      // Predicated region
      $region21: #{fwd.1} parent=15 // pred_check
        %p134 = pneg %p68
      $region22: #{fwd.1} parent=15 // pred_check_branch
        %136 = sbr.rel (%p134) target = $region24
      $region23: #{fwd.1} parent=15 // pred_region
        %s137 = smul.u32 3, %s15
        %p138 = scmp.lt.s32.totalorder %s137, 5
        %s139 = scalar_select %p138, %s137, 5
        %s140 = scalar_lea.vmem %s1, %s139
        %s141 = smul.u32 3, %s15
      $region24: #{fwd.1} parent=15 // pred_fallthru
        _
    $region16: #{fwd.1} parent=5 // pred_fallthru
      _
    %p142 = scmp.le.s32.totalorder 1, %s8
    %p143 = scmp.lt.s32.totalorder %s8, 3
    %p144 = pnand %p142, %p143
    %p145 = pneg %p144
    // Predicated region
    $region25: #{fwd.1} parent=5 // pred_check
      _
    $region26: #{fwd.1} parent=5 // pred_check_branch
      %147 = sbr.rel (%p144) target = $region28
    $region27: #{fwd.1} parent=5 // pred_region
      %s148 = ssub.s32 %s8, 1
      %s149 = smul.u32 3, %s17
      %p150 = scmp.lt.s32.totalorder %s18, 0
      %s151 = scalar_select %p150, %s18, 0
      %p152 = scmp.lt.s32.totalorder %s149, 5
      %s153 = scalar_select %p152, %s149, 5
      %s154 = smul.addr %s151, 6
      %s155 = sadd.s32 %s153, %s154
      %s156 = smul.addr %s155, 2
      %s157 = scalar_lea.vmem %s0, %s156
      %p158 = pneg %p48
      %p159 = pneg %p45
      %s160 = smul.u32 3, %s17
      %p161 = scmp.lt.s32.totalorder %s160, 5
      %s162 = scalar_select %p161, %s160, 5
      %s163 = scalar_lea.vmem %s1, %s162
      %p164 = pneg %p74
      %p165 = pneg %p71
      %p166 = pneg %p102
      %p167 = pneg %p99
      %s168 = smul.u32 3, %s17
      %p169 = scmp.lt.s32.totalorder %s18, 0
      %s170 = scalar_select %p169, %s18, 0
      %p171 = scmp.lt.s32.totalorder %s168, 5
      %s172 = scalar_select %p171, %s168, 5
      %s173 = smul.addr %s170, 6
      %s174 = sadd.s32 %s172, %s173
      %s175 = smul.addr %s174, 2
      %s176 = scalar_lea.vmem %s2, %s175
      %s177 = smul.u32 3, %s17
      %p178 = scmp.lt.s32.totalorder %s18, 0
      %s179 = scalar_select %p178, %s18, 0
      %p180 = scmp.lt.s32.totalorder %s177, 5
      %s181 = scalar_select %p180, %s177, 5
      %s182 = smul.addr %s179, 6
      %s183 = sadd.s32 %s181, %s182
      %s184 = smul.addr %s183, 2
      %s185 = scalar_lea.vmem %s0, %s184
      %s186 = smul.u32 3, %s17
      %s187 = smul.u32 3, %s17
      %p188 = scmp.lt.s32.totalorder %s187, 5
      %s189 = scalar_select %p188, %s187, 5
      %s190 = scalar_lea.vmem %s1, %s189
      %s191 = smul.u32 3, %s17
      %s192 = smul.u32 3, %s17
      %p193 = scmp.lt.s32.totalorder %s18, 0
      %s194 = scalar_select %p193, %s18, 0
      %p195 = scmp.lt.s32.totalorder %s192, 5
      %s196 = scalar_select %p195, %s192, 5
      %s197 = smul.addr %s194, 6
      %s198 = sadd.s32 %s196, %s197
      %s199 = smul.addr %s198, 2
      %s200 = scalar_lea.vmem %s2, %s199
      %s201 = smul.u32 3, %s17
      %v202 = vld [vmem:[%s185] sm:$0x3f]
      %v203 = vld [vmem:[%s190] sm:$0x7]
      %v205 = vlaneseq
      %v206 = vshrl.u32 %v205, 7
      %v207 = vsub.s32 0, %v206
      %v208 = vrot.slane %v203, %v207
      %v209 = vlaneseq
      %v210 = vshrl.u32 %v209, 7
      %v211 = vsub.s32 1, %v210
      %v212 = vrot.slane %v203, %v211
      %v213 = vlaneseq
      %v214 = vshrl.u32 %v213, 7
      %v215 = vsub.s32 2, %v214
      %v216 = vrot.slane %v203, %v215
      %v217 = vcombine.low %v208, %v212
      %v219 = vunpack.c.l.s4 1983009808
      %v220 = vunpack.c.0.s8 %v219
      %v221 = vlaneseq
      %v222 = vshrl.u32 %v221, 7
      %v223 = vsub.s32 %v220, %v222
      %v224 = vrot.slane %v217, %v223
      %v226 = vunpack.c.l.s4 1983009808
      %v227 = vunpack.c.0.s8 %v226
      %v228 = vlaneseq
      %v229 = vshrl.u32 %v228, 7
      %v230 = vsub.s32 %v227, %v229
      %v231 = vrot.slane %v216, %v230
      %v232 = vcombine.low %v224, %v231
      %v234 = vadd.f32 %v202, %v232
      %235 = vst [vmem:[%s200] sm:$0x3f] %v234
      %s236 = smul.u32 3, %s17
      %p237 = scmp.lt.s32.totalorder %s18, 0
      %s238 = scalar_select %p237, %s18, 0
      %p239 = scmp.lt.s32.totalorder %s236, 5
      %s240 = scalar_select %p239, %s236, 5
      %s241 = smul.addr %s238, 6
      %s242 = sadd.s32 %s240, %s241
      %s243 = smul.addr %s242, 2
      %s244 = scalar_lea.vmem %s2, %s243
      // Predicated region
      $region29: #{fwd.1} parent=27 // pred_check
        %p245 = pneg %p99
      $region30: #{fwd.1} parent=27 // pred_check_branch
        %247 = sbr.rel (%p245) target = $region32
      $region31: #{fwd.1} parent=27 // pred_region
        %s248 = smul.u32 3, %s17
      $region32: #{fwd.1} parent=27 // pred_fallthru
        _
    $region28: #{fwd.1} parent=5 // pred_fallthru
      _
    %p249 = scmp.le.s32.totalorder 2, %s8
    // Predicated region
    $region33: #{fwd.1} parent=5 // pred_check
      %p250 = pneg %p249
    $region34: #{fwd.1} parent=5 // pred_check_branch
      %252 = sbr.rel (%p250) target = $region36
    $region35: #{fwd.1} parent=5 // pred_region
      %s253 = ssub.s32 %s8, 2
      // Predicated region
      $region37: #{fwd.1} parent=35 // pred_check
        %p254 = pneg %p105
      $region38: #{fwd.1} parent=35 // pred_check_branch
        %256 = sbr.rel (%p254) target = $region40
      $region39: #{fwd.1} parent=35 // pred_region
        %s257 = smul.u32 3, %s19
        %p258 = scmp.lt.s32.totalorder %s20, 0
        %s259 = scalar_select %p258, %s20, 0
        %p260 = scmp.lt.s32.totalorder %s257, 5
        %s261 = scalar_select %p260, %s257, 5
        %s262 = smul.addr %s259, 6
        %s263 = sadd.s32 %s261, %s262
        %s264 = smul.addr %s263, 2
        %s265 = scalar_lea.vmem %s2, %s264
      $region40: #{fwd.1} parent=35 // pred_fallthru
        _
    $region36: #{fwd.1} parent=5 // pred_fallthru
      _
  $region6: #{fwd.1} parent=0 // loop_footer
    %s12 = sadd.s32 1, %s8
  $region7: #{fwd.1} parent=0 // loop_footer_branch
    %7 = sbr.rel target = $region3
  $region8: #{fwd.1} parent=0 // loop_exit
    _

</llo_original>
